<compile_context>
chip_gen: v6e
topology: v6e:2x2x1
jax: 0.10.0
libtpu: 0.0.40
codegen_flags: <defaults>
</compile_context>

<pallas_src>
import jax
import jax.numpy as jnp
from jax import lax
from jax.experimental import pallas as pl
from jax.experimental.pallas import tpu as pltpu


def _round_up(x, m):
    return ((x + m - 1) // m) * m


def _vmem_tile_bytes(rows, cols, itemsize):
    # VMEM footprint of a 2-D buffer after (8, 128) layout padding.
    return _round_up(max(rows, 1), 8) * _round_up(max(cols, 1), 128) * itemsize


def _vmem_capacity_bytes():
    try:
        return int(pltpu.get_tpu_info().vmem_capacity_bytes)
    except Exception:
        return 64 << 20  # conservative: v7x per-TC physical VMEM


# ----------------------------- kernels --------------------------------------


def _fused_onehot_kernel(idx_ref, tbl_ref, w_ref, b_ref, o_ref):
    """Gather(e_idx) + fc1 fused; everything resident in VMEM (tiny-V path).

    idx_ref: (n_pad, 1) int32  resident whole array (no per-step idx DMA)
    tbl_ref: (V, F)            resident attribute-embedding table
    w_ref:   (F, D_out)        resident fc1 weight (pre-transposed)
    b_ref:   (1, D_out)        resident fc1 bias (f32)
    o_ref:   (tm, D_out)       output row block
    """
    tm = o_ref.shape[0]
    v = tbl_ref.shape[0]
    start = pl.multiple_of(pl.program_id(0) * tm, tm)
    idx = idx_ref[pl.ds(start, tm), :]  # (tm, 1)
    # Exact 0/1 row selection on the MXU.  Only used for tiny V (<= 512); for
    # larger V the (tm, V) intermediate and O(tm*V) VALU work make a real
    # gather cheaper (see _fused_smem_gather_kernel).
    onehot = (idx == lax.broadcasted_iota(jnp.int32, (tm, v), 1)).astype(
        tbl_ref.dtype
    )
    x = jnp.dot(onehot, tbl_ref[...], preferred_element_type=jnp.float32)
    x = x.astype(w_ref.dtype)
    o_ref[...] = (
        jnp.dot(x, w_ref[...], preferred_element_type=jnp.float32) + b_ref[...]
    ).astype(o_ref.dtype)


def _fused_smem_gather_kernel(idx_smem, tbl_ref, w_ref, b_ref, o_ref, x_scratch):
    """Gather(e_idx) + fc1 fused; indices scalar-prefetched into SMEM.

    Real row gather (dynamic sublane slices of the resident table) instead of
    the one-hot matmul: no (tm, V) intermediate, no zero-multiply MXU work.
    """
    tm = o_ref.shape[0]
    base = pl.multiple_of(pl.program_id(0) * tm, tm)

    def gather_row(j, carry):
        r = idx_smem[base + j]
        x_scratch[pl.ds(j, 1), :] = tbl_ref[pl.ds(r, 1), :]
        return carry

    lax.fori_loop(0, tm, gather_row, 0, unroll=8)
    x = x_scratch[...].astype(w_ref.dtype)
    o_ref[...] = (
        jnp.dot(x, w_ref[...], preferred_element_type=jnp.float32) + b_ref[...]
    ).astype(o_ref.dtype)


def _linear_kernel(x_ref, w_ref, b_ref, o_ref):
    """fc1 on pre-gathered embedding rows (large-table fallback)."""
    o_ref[...] = (
        jnp.dot(x_ref[...], w_ref[...], preferred_element_type=jnp.float32)
        + b_ref[...]
    ).astype(o_ref.dtype)


# ----------------------------- wrapper ---------------------------------------


def attr_encoder_forward(
    e_idx,
    att_features,
    fc1_weight,
    fc1_bias,
    *,
    block_m=256,
    use_bf16=False,
    pad_output_lanes=False,
    small_table_bytes=512 * 1024,
    onehot_max_v=512,
):
    """e_a = att_features[e_idx] @ fc1_weight.T + fc1_bias  (Pallas TPU).

    e_idx:        (N,)   int
    att_features: (V, F) float32  -- nn.Embedding.from_pretrained table
    fc1_weight:   (D, F) float32  -- PyTorch nn.Linear weight layout
    fc1_bias:     (D,)   float32
    returns:      (N, D) float32
    """
    N = int(e_idx.shape[0])
    V, F = att_features.shape
    D = fc1_weight.shape[0]

    compute_dtype = jnp.bfloat16 if use_bf16 else jnp.float32
    itemsize = jnp.dtype(compute_dtype).itemsize

    # Lane-dense output (last dim multiple of 128 -> unmasked vst) is the
    # biggest store-side lever, but costs 4x output HBM bytes at D=32; only
    # enable when the consumer can take/ignore the padded columns.
    d_out = _round_up(D, 128) if pad_output_lanes else D

    tbl = att_features.astype(compute_dtype)               # (V, F)
    w_t = fc1_weight.T.astype(compute_dtype)               # (F, D)
    b2d = fc1_bias.reshape(1, D).astype(jnp.float32)       # bias added in f32
    if d_out != D:
        w_t = jnp.pad(w_t, ((0, 0), (0, d_out - D)))
        b2d = jnp.pad(b2d, ((0, 0), (0, d_out - D)))
    idx = e_idx.astype(jnp.int32)

    # Row tile: multiple of 8 sublanes; big tiles are nearly free in VMEM since
    # table/weight/bias are resident (per-grid-step overhead ~0.35us).
    tm = max(8, min(block_m, _round_up(N, 8)))
    n_pad = _round_up(N, tm)
    grid = (n_pad // tm,)

    vmem_cap = _vmem_capacity_bytes()
    vmem_budget = vmem_cap // 4  # generation-aware residency budget

    table_bytes = V * F * itemsize
    gather_bytes = N * F * itemsize
    tbl_vmem = _vmem_tile_bytes(V, F, itemsize)
    wb_vmem = _vmem_tile_bytes(F, d_out, itemsize) + _vmem_tile_bytes(1, d_out, 4)

    # Fused-path gate: HBM traffic, not just VMEM fit.  Copying the whole table
    # is worth it only when it is tiny or no worse than ~2x what a pure row
    # gather would move -- and only if it fits the residency budget.
    fused = (
        (table_bytes <= small_table_bytes or table_bytes <= 2 * gather_bytes)
        and (tbl_vmem + wb_vmem) <= vmem_budget
    )

    def _mosaic_params(vmem_need_bytes):
        limit = int(min(vmem_cap, max(vmem_need_bytes + (4 << 20), 16 << 20)))
        # At N=8 the grid is a single step, so "parallel" shards nothing; when
        # N is large enough to shard on v7x, each TensorCore DMAs its own copy
        # of the (gated-tiny) resident table -- acceptable at these sizes.
        return pltpu.CompilerParams(
            dimension_semantics=("parallel",), vmem_limit_bytes=limit
        )

    if fused and V <= onehot_max_v and n_pad <= 4096:
        # --- tiny-V fused path: one-hot MXU gather, everything resident ------
        idx2d = jnp.pad(idx, (0, n_pad - N)).reshape(n_pad, 1)
        need = (
            tbl_vmem
            + wb_vmem
            + _vmem_tile_bytes(n_pad, 1, 4)          # resident indices
            + 2 * _vmem_tile_bytes(tm, d_out, 4)     # double-buffered out block
            + _vmem_tile_bytes(tm, V, 4)             # one-hot intermediate
            + _vmem_tile_bytes(tm, F, 4)             # gathered-rows intermediate
        )
        out = pl.pallas_call(
            _fused_onehot_kernel,
            out_shape=jax.ShapeDtypeStruct((n_pad, d_out), jnp.float32),
            grid=grid,
            in_specs=[
                pl.BlockSpec(memory_space=pltpu.MemorySpace.VMEM),  # indices
                pl.BlockSpec(memory_space=pltpu.MemorySpace.VMEM),  # table
                pl.BlockSpec(memory_space=pltpu.MemorySpace.VMEM),  # weight
                pl.BlockSpec(memory_space=pltpu.MemorySpace.VMEM),  # bias
            ],
            out_specs=pl.BlockSpec((tm, d_out), lambda i: (i, 0)),
            compiler_params=_mosaic_params(need),
        )(idx2d, tbl, w_t, b2d)

    elif fused and n_pad <= 32768:
        # --- small-table, larger-V fused path: SMEM-indexed row gather -------
        idx_pad = jnp.pad(idx, (0, n_pad - N))
        need = (
            tbl_vmem
            + wb_vmem
            + 2 * _vmem_tile_bytes(tm, d_out, 4)     # double-buffered out block
            + _vmem_tile_bytes(tm, F, itemsize)      # gather scratch
        )
        out = pl.pallas_call(
            _fused_smem_gather_kernel,
            out_shape=jax.ShapeDtypeStruct((n_pad, d_out), jnp.float32),
            grid_spec=pltpu.PrefetchScalarGridSpec(
                num_scalar_prefetch=1,
                grid=grid,
                in_specs=[
                    pl.BlockSpec(memory_space=pltpu.MemorySpace.VMEM),  # table
                    pl.BlockSpec(memory_space=pltpu.MemorySpace.VMEM),  # weight
                    pl.BlockSpec(memory_space=pltpu.MemorySpace.VMEM),  # bias
                ],
                out_specs=pl.BlockSpec((tm, d_out), lambda i, idx_ref: (i, 0)),
                scratch_shapes=[pltpu.VMEM((tm, F), compute_dtype)],
            ),
            compiler_params=_mosaic_params(need),
        )(idx_pad, tbl, w_t, b2d)

    else:
        # --- large-table fallback: gather only the rows actually needed ------
        # TODO(synk): for large N, gather inside the kernel (scalar-prefetched
        # indices + per-row HBM->VMEM DMA) to avoid the extra (N, F) HBM
        # round-trip that jnp.take materializes; K-tile the (F, d_out) weight
        # with an 'arbitrary' reduction axis if it ever outgrows VMEM.
        x = jnp.take(att_features, idx, axis=0).astype(compute_dtype)  # (N, F)
        x = jnp.pad(x, ((0, n_pad - N), (0, 0)))
        need = (
            wb_vmem
            + 2 * _vmem_tile_bytes(tm, F, itemsize)  # double-buffered x block
            + 2 * _vmem_tile_bytes(tm, d_out, 4)     # double-buffered out block
        )
        out = pl.pallas_call(
            _linear_kernel,
            out_shape=jax.ShapeDtypeStruct((n_pad, d_out), jnp.float32),
            grid=grid,
            in_specs=[
                pl.BlockSpec((tm, F), lambda i: (i, 0)),            # gathered rows
                pl.BlockSpec(memory_space=pltpu.MemorySpace.VMEM),  # weight
                pl.BlockSpec(memory_space=pltpu.MemorySpace.VMEM),  # bias
            ],
            out_specs=pl.BlockSpec((tm, d_out), lambda i: (i, 0)),
            compiler_params=_mosaic_params(need),
        )(x, w_t, b2d)

    return out[:N, :D]


def xavier_normal(key, shape):
    fan_out, fan_in = shape
    std = (2.0 / (fan_in + fan_out)) ** 0.5
    return std * jax.random.normal(key, shape, dtype=jnp.float32)


if __name__ == "__main__":
    # Small, module-consistent shapes:
    #   attribute-feature rows V=32, feature dim F=64, args.dim D=32, batch N=8
    V, F, D, N = 32, 64, 32, 8

    key = jax.random.PRNGKey(0)
    k_att, k_w1, k_b1, k_idx = jax.random.split(key, 4)

    att_features = jax.random.normal(k_att, (V, F), dtype=jnp.float32)
    fc1_weight = xavier_normal(k_w1, (D, F))  # nn.init.xavier_normal_
    bound = 1.0 / (F ** 0.5)
    fc1_bias = jax.random.uniform(k_b1, (D,), jnp.float32, -bound, bound)
    # fc2 exists in __init__ but is unused by forward; omitted from the hot path.
    e_idx = jax.random.randint(k_idx, (N,), 0, V, dtype=jnp.int32)
    e_i = None  # unused by forward, kept for signature parity

    out = attr_encoder_forward(e_idx, att_features, fc1_weight, fc1_bias)
    out = jax.block_until_ready(out)

    # reference check (plain JAX)
    ref = att_features[e_idx] @ fc1_weight.T + fc1_bias
    assert out.shape == (N, D)
    assert jnp.allclose(out, ref, atol=1e-5, rtol=1e-5), "mismatch vs reference"

    print("KERNEL_OK")
</pallas_src>

<mosaic_0001>
module attributes {stable_mosaic.version = 11 : i64} {
  func.func @_fused_onehot_kernel(%arg0: i32, %arg1: memref<8x1xi32, #tpu.memory_space<vmem>>, %arg2: memref<32x64xf32, #tpu.memory_space<vmem>>, %arg3: memref<64x32xf32, #tpu.memory_space<vmem>>, %arg4: memref<1x32xf32, #tpu.memory_space<vmem>>, %arg5: memref<8x32xf32, #tpu.memory_space<vmem>>) attributes {dimension_semantics = [#tpu.dimension_semantics<parallel>], iteration_bounds = array<i64: 1>, scalar_prefetch = 0 : i64, scratch_operands = 0 : i64, tpu.core_type = #tpu.core_type<tc>, window_params = [{pipeline_mode = #tpu.pipeline_mode<synchronous>, transform_indices = @transform_0, window_bounds = array<i64: 8, 1>}, {pipeline_mode = #tpu.pipeline_mode<synchronous>, transform_indices = @transform_1, window_bounds = array<i64: 32, 64>}, {pipeline_mode = #tpu.pipeline_mode<synchronous>, transform_indices = @transform_2, window_bounds = array<i64: 64, 32>}, {pipeline_mode = #tpu.pipeline_mode<synchronous>, transform_indices = @transform_3, window_bounds = array<i64: 1, 32>}, {transform_indices = @transform_4, window_bounds = array<i64: 8, 32>}]} {
    %c8_i32 = arith.constant 8 : i32
    %0 = arith.muli %arg0, %c8_i32 : i32
    %1 = tpu.assume_multiple %0, 8 : i32
    %2 = arith.index_cast %1 : i32 to index
    %c0 = arith.constant 0 : index
    %3 = vector.load %arg1[%2, %c0] : memref<8x1xi32, #tpu.memory_space<vmem>>, vector<8x1xi32>
    %4 = tpu.iota {dimensions = array<i32: 1>} : vector<8x32xi32>
    %5 = vector.broadcast %3 : vector<8x1xi32> to vector<8x32xi32>
    %6 = arith.cmpi eq, %5, %4 : vector<8x32xi32>
    %7 = arith.extui %6 : vector<8x32xi1> to vector<8x32xi32>
    %8 = arith.sitofp %7 : vector<8x32xi32> to vector<8x32xf32>
    %c0_0 = arith.constant 0 : index
    %c0_1 = arith.constant 0 : index
    %9 = vector.load %arg2[%c0_0, %c0_1] : memref<32x64xf32, #tpu.memory_space<vmem>>, vector<32x64xf32>
    %cst = arith.constant dense<0.000000e+00> : vector<8x64xf32>
    %10 = tpu.matmul %8, %9, %cst {dimension_numbers = #tpu.dot_dimension_numbers<[1], [0], [0], [1], [0, 0, 1, 1], [], []>} : vector<8x32xf32>, vector<32x64xf32>, vector<8x64xf32> -> vector<8x64xf32>
    %c0_2 = arith.constant 0 : index
    %c0_3 = arith.constant 0 : index
    %11 = vector.load %arg3[%c0_2, %c0_3] : memref<64x32xf32, #tpu.memory_space<vmem>>, vector<64x32xf32>
    %cst_4 = arith.constant dense<0.000000e+00> : vector<8x32xf32>
    %12 = tpu.matmul %10, %11, %cst_4 {dimension_numbers = #tpu.dot_dimension_numbers<[1], [0], [0], [1], [0, 0, 1, 1], [], []>} : vector<8x64xf32>, vector<64x32xf32>, vector<8x32xf32> -> vector<8x32xf32>
    %c0_5 = arith.constant 0 : index
    %c0_6 = arith.constant 0 : index
    %13 = vector.load %arg4[%c0_5, %c0_6] : memref<1x32xf32, #tpu.memory_space<vmem>>, vector<1x32xf32>
    %14 = vector.broadcast %13 : vector<1x32xf32> to vector<8x32xf32>
    %15 = arith.addf %12, %14 : vector<8x32xf32>
    %c0_7 = arith.constant 0 : index
    %c0_8 = arith.constant 0 : index
    %16 = vector.load %arg5[%c0_7, %c0_8] : memref<8x32xf32, #tpu.memory_space<vmem>>, vector<8x32xf32>
    tpu.vector_store %arg5[%c0_7, %c0_8], %15 {strides = array<i32>} : memref<8x32xf32, #tpu.memory_space<vmem>>, vector<8x32xf32>,
    return
  }
  func.func @transform_0(%arg0: i32) -> (i32, i32) {
    %c0_i32 = arith.constant 0 : i32
    %c0_i32_0 = arith.constant 0 : i32
    %c0_i32_1 = arith.constant 0 : i32
    return %c0_i32, %c0_i32_0 : i32, i32
  }
  func.func @transform_1(%arg0: i32) -> (i32, i32) {
    %c0_i32 = arith.constant 0 : i32
    %c0_i32_0 = arith.constant 0 : i32
    %c0_i32_1 = arith.constant 0 : i32
    return %c0_i32, %c0_i32_0 : i32, i32
  }
  func.func @transform_2(%arg0: i32) -> (i32, i32) {
    %c0_i32 = arith.constant 0 : i32
    %c0_i32_0 = arith.constant 0 : i32
    %c0_i32_1 = arith.constant 0 : i32
    return %c0_i32, %c0_i32_0 : i32, i32
  }
  func.func @transform_3(%arg0: i32) -> (i32, i32) {
    %c0_i32 = arith.constant 0 : i32
    %c0_i32_0 = arith.constant 0 : i32
    %c0_i32_1 = arith.constant 0 : i32
    return %c0_i32, %c0_i32_0 : i32, i32
  }
  func.func @transform_4(%arg0: i32) -> (i32, i32) {
    %c0_i32 = arith.constant 0 : i32
    %c0_i32_0 = arith.constant 0 : i32
    return %arg0, %c0_i32 : i32, i32
  }
}

</mosaic_0001>

<llo_original>
// kernel: tpu_custom_call.1
$region0: #{tpu_custom_call.1}
  #allocation0 [shape = 'u32[]', space=smem, size = 0x4, offset = 0x4, fixed_abs, tag = 'smem constant byte address 0x4 - core index']
  #allocation1 [shape = 'u32[144,128]{1,0:T(1,128)}', space=vmem, size = 0x12000, scoped, tag = 'internal scratch']
  %s0 = inlined_call_operand.vmem [shape: s32[8,1], index: 0, kind: input, shape index: {}]
  %s1 = inlined_call_operand.vmem [shape: f32[32,64], index: 1, kind: input, shape index: {}]
  %s2 = inlined_call_operand.vmem [shape: f32[64,32], index: 2, kind: input, shape index: {}]
  %s3 = inlined_call_operand.vmem [shape: f32[1,32], index: 3, kind: input, shape index: {}]
  %s4 = inlined_call_operand.hbm [shape: f32[8,32], index: 4, kind: output, shape index: {}]
  %s5 = sld [smem:[#allocation0]]
  $region26: #{tpu_custom_call.1} parent=0
    _
  %s7 = ssub.s32 1, %s5
  %s8 = scalar_select 0, %s7, %s5
  $region1: #{tpu_custom_call.1} parent=0
    #allocation2 [shape = 'u8[4096]{0}', space=vmem, size = 0x1000, scoped, tag = 'output window, operand 0, single buffered']
    #allocation3 [shape = 's32[1]{0}', space=sflag, size = 0x4, scoped, tag = 'scoped memory for tpu_custom_call.1']
    %9 = vsyncpa [#allocation3], 0
    // Predicated region
    $region2: #{tpu_custom_call.1} parent=1 // pred_check
      _
    $region3: #{tpu_custom_call.1} parent=1 // pred_check_branch
      %11 = sbr.rel (0) target = $region5
    $region4: #{tpu_custom_call.1} parent=1 // pred_region
      _
    $region5: #{tpu_custom_call.1} parent=1 // pred_fallthru
      _
    // Predicated region
    $region6: #{tpu_custom_call.1} parent=1 // pred_check
      _
    $region7: #{tpu_custom_call.1} parent=1 // pred_check_branch
      %13 = sbr.rel (0) target = $region9
    $region8: #{tpu_custom_call.1} parent=1 // pred_region
      _
    $region9: #{tpu_custom_call.1} parent=1 // pred_fallthru
      _
    // Predicated region
    $region10: #{tpu_custom_call.1} parent=1 // pred_check
      _
    $region11: #{tpu_custom_call.1} parent=1 // pred_check_branch
      %15 = sbr.rel (0) target = $region13
    $region12: #{tpu_custom_call.1} parent=1 // pred_region
      _
    $region13: #{tpu_custom_call.1} parent=1 // pred_fallthru
      _
    // Predicated region
    $region14: #{tpu_custom_call.1} parent=1 // pred_check
      _
    $region15: #{tpu_custom_call.1} parent=1 // pred_check_branch
      %17 = sbr.rel (0) target = $region17
    $region16: #{tpu_custom_call.1} parent=1 // pred_region
      _
    $region17: #{tpu_custom_call.1} parent=1 // pred_fallthru
      _
    %s18 = smul.u32 0, 8
    %s19 = scalar_lea.vmem %s0, %s18
    %v20 = vld [vmem:[%s19] sm:$0xff]
    %v21 = vlaneseq
    %v22 = vand.u32 %v21, 127
    %23 = vset.pattern.permute.xlu0 0
    %24 = vperm.xlu0 %23, %v20
    %v25 = vpop.permute.xlu0 %24
    %vm26 = vcmp.eq.s32.totalorder %v25, %v22
    %v27 = vsel %vm26, 1, 0
    %v28 = vcvt.s32.f32 %v27
    %v29 = vld [vmem:[%s1] sm:$0xff]
    %v30 = vld [vmem:[%s1 + $0x8] sm:$0xff]
    %v31 = vld [vmem:[%s1 + $0x10] sm:$0xff]
    %v32 = vld [vmem:[%s1 + $0x18] sm:$0xff]
    %vm33 = vcmask 261120
    %v35 = vsel %vm33, %v28, 0
    %37 = vmatprep.subr.mxu0 0.0
    %38 = vmatpush1.msra.mxu0 0.0
    %39 = vmatprep.subr.mxu0 0.0
    %40 = vmatpush1.msra.mxu0 0.0
    %41 = vmatprep.subr.mxu0 0.0
    %42 = vmatpush1.msra.mxu0 0.0
    %43 = vmatprep.subr.mxu0 0.0
    %44 = vmatpush1.msra.mxu0 0.0
    %45 = vmatprep.subr.mxu0 0.0
    %46 = vmatpush1.msra.mxu0 0.0
    %47 = vmatprep.subr.mxu0 0.0
    %48 = vmatpush1.msra.mxu0 0.0
    %49 = vmatprep.subr.mxu0 0.0
    %50 = vmatpush1.msra.mxu0 0.0
    %51 = vmatprep.subr.mxu0 0.0
    %52 = vmatpush1.msra.mxu0 0.0
    %53 = vmatprep.subr.mxu0 0.0
    %54 = vmatpush1.msra.mxu0 0.0
    %55 = vmatprep.subr.mxu0 0.0
    %56 = vmatpush1.msra.mxu0 0.0
    %57 = vmatprep.subr.mxu0 0.0
    %58 = vmatpush1.msra.mxu0 0.0
    %59 = vmatprep.subr.mxu0 0.0
    %60 = vmatpush1.msra.mxu0 0.0
    %61 = vmatprep.subr.mxu0 0.0
    %62 = vmatpush1.msra.mxu0 %v32
    %63 = vmatprep.subr.mxu0 0.0
    %64 = vmatpush1.msra.mxu0 %v31
    %65 = vmatprep.subr.mxu0 0.0
    %66 = vmatpush1.msra.mxu0 %v30
    %67 = vmatprep.subr.mxu0 0.0
    %68 = vmatpush1.msra.mxu0 %v29
    %69 = vmatprep.subr.mxu0 0.0
    %70 = vmatpush2.msra.mxu0 0.0
    %71 = vmatprep.subr.mxu0 0.0
    %72 = vmatpush2.msra.mxu0 0.0
    %73 = vmatprep.subr.mxu0 0.0
    %74 = vmatpush2.msra.mxu0 0.0
    %75 = vmatprep.subr.mxu0 0.0
    %76 = vmatpush2.msra.mxu0 0.0
    %77 = vmatprep.subr.mxu0 0.0
    %78 = vmatpush2.msra.mxu0 0.0
    %79 = vmatprep.subr.mxu0 0.0
    %80 = vmatpush2.msra.mxu0 0.0
    %81 = vmatprep.subr.mxu0 0.0
    %82 = vmatpush2.msra.mxu0 0.0
    %83 = vmatprep.subr.mxu0 0.0
    %84 = vmatpush2.msra.mxu0 0.0
    %85 = vmatprep.subr.mxu0 0.0
    %86 = vmatpush2.msra.mxu0 0.0
    %87 = vmatprep.subr.mxu0 0.0
    %88 = vmatpush2.msra.mxu0 0.0
    %89 = vmatprep.subr.mxu0 0.0
    %90 = vmatpush2.msra.mxu0 0.0
    %91 = vmatprep.subr.mxu0 0.0
    %92 = vmatpush2.msra.mxu0 0.0
    %93 = vmatprep.subr.mxu0 0.0
    %94 = vmatpush2.msra.mxu0 0.0
    %95 = vmatprep.subr.mxu0 0.0
    %96 = vmatpush2.msra.mxu0 0.0
    %97 = vmatprep.subr.mxu0 0.0
    %98 = vmatpush2.msra.mxu0 0.0
    %99 = vmatprep.subr.mxu0 0.0
    %100 = vmatpush2.msra.mxu0 0.0
    %101 = vmatprep.mubr.f32.mxu0 0.0
    %102 = vmatmul.mubr.f32.gmra.mxu0 %v35
    %v103 = vpop.f32.mrf.mxu0
    %v104 = vadd.f32 0.0, %v103
    %v105 = vpop.f32.mrf.mxu0
    %106 = vdwg.mxu0
    %v107 = vld [vmem:[%s2] sm:$0xff]
    %v108 = vld [vmem:[%s2 + $0x8] sm:$0xff]
    %v109 = vld [vmem:[%s2 + $0x10] sm:$0xff]
    %v110 = vld [vmem:[%s2 + $0x18] sm:$0xff]
    %v111 = vld [vmem:[%s2 + $0x20] sm:$0xff]
    %v112 = vld [vmem:[%s2 + $0x28] sm:$0xff]
    %v113 = vld [vmem:[%s2 + $0x30] sm:$0xff]
    %v114 = vld [vmem:[%s2 + $0x38] sm:$0xff]
    %v115 = vld [vmem:[%s3] sm:$0x1]
    %v117 = vlaneseq
    %v118 = vshrl.u32 %v117, 7
    %v119 = vsub.s32 0, %v118
    %v120 = vrot.slane %v115, %v119
    %vm122 = vcmask 523264
    %v124 = vsel %vm122, %v104, 0
    %126 = vmatprep.subr.mxu0 0.0
    %127 = vmatpush1.msra.mxu0 0.0
    %128 = vmatprep.subr.mxu0 0.0
    %129 = vmatpush1.msra.mxu0 0.0
    %130 = vmatprep.subr.mxu0 0.0
    %131 = vmatpush1.msra.mxu0 0.0
    %132 = vmatprep.subr.mxu0 0.0
    %133 = vmatpush1.msra.mxu0 0.0
    %134 = vmatprep.subr.mxu0 0.0
    %135 = vmatpush1.msra.mxu0 0.0
    %136 = vmatprep.subr.mxu0 0.0
    %137 = vmatpush1.msra.mxu0 0.0
    %138 = vmatprep.subr.mxu0 0.0
    %139 = vmatpush1.msra.mxu0 0.0
    %140 = vmatprep.subr.mxu0 0.0
    %141 = vmatpush1.msra.mxu0 0.0
    %142 = vmatprep.subr.mxu0 0.0
    %143 = vmatpush1.msra.mxu0 %v114
    %144 = vmatprep.subr.mxu0 0.0
    %145 = vmatpush1.msra.mxu0 %v113
    %146 = vmatprep.subr.mxu0 0.0
    %147 = vmatpush1.msra.mxu0 %v112
    %148 = vmatprep.subr.mxu0 0.0
    %149 = vmatpush1.msra.mxu0 %v111
    %150 = vmatprep.subr.mxu0 0.0
    %151 = vmatpush1.msra.mxu0 %v110
    %152 = vmatprep.subr.mxu0 0.0
    %153 = vmatpush1.msra.mxu0 %v109
    %154 = vmatprep.subr.mxu0 0.0
    %155 = vmatpush1.msra.mxu0 %v108
    %156 = vmatprep.subr.mxu0 0.0
    %157 = vmatpush1.msra.mxu0 %v107
    %158 = vmatprep.subr.mxu0 0.0
    %159 = vmatpush2.msra.mxu0 0.0
    %160 = vmatprep.subr.mxu0 0.0
    %161 = vmatpush2.msra.mxu0 0.0
    %162 = vmatprep.subr.mxu0 0.0
    %163 = vmatpush2.msra.mxu0 0.0
    %164 = vmatprep.subr.mxu0 0.0
    %165 = vmatpush2.msra.mxu0 0.0
    %166 = vmatprep.subr.mxu0 0.0
    %167 = vmatpush2.msra.mxu0 0.0
    %168 = vmatprep.subr.mxu0 0.0
    %169 = vmatpush2.msra.mxu0 0.0
    %170 = vmatprep.subr.mxu0 0.0
    %171 = vmatpush2.msra.mxu0 0.0
    %172 = vmatprep.subr.mxu0 0.0
    %173 = vmatpush2.msra.mxu0 0.0
    %174 = vmatprep.subr.mxu0 0.0
    %175 = vmatpush2.msra.mxu0 0.0
    %176 = vmatprep.subr.mxu0 0.0
    %177 = vmatpush2.msra.mxu0 0.0
    %178 = vmatprep.subr.mxu0 0.0
    %179 = vmatpush2.msra.mxu0 0.0
    %180 = vmatprep.subr.mxu0 0.0
    %181 = vmatpush2.msra.mxu0 0.0
    %182 = vmatprep.subr.mxu0 0.0
    %183 = vmatpush2.msra.mxu0 0.0
    %184 = vmatprep.subr.mxu0 0.0
    %185 = vmatpush2.msra.mxu0 0.0
    %186 = vmatprep.subr.mxu0 0.0
    %187 = vmatpush2.msra.mxu0 0.0
    %188 = vmatprep.subr.mxu0 0.0
    %189 = vmatpush2.msra.mxu0 0.0
    %190 = vmatprep.mubr.f32.mxu0 0.0
    %191 = vmatmul.mubr.f32.gmra.mxu0 %v124
    %v192 = vpop.f32.mrf.mxu0
    %v193 = vadd.f32 %v120, %v192
    %v194 = vpop.f32.mrf.mxu0
    %195 = vdwg.mxu0
    %196 = vst.msk [vmem:[#allocation2] sm:$0xff] %vm33, %v193
    // Predicated region
    $region18: #{tpu_custom_call.1} parent=1 // pred_check
      _
    $region19: #{tpu_custom_call.1} parent=1 // pred_check_branch
      %198 = sbr.rel (0) target = $region21
    $region20: #{tpu_custom_call.1} parent=1 // pred_region
      %s200 = ssub.s32 128, 128
      %201 = vsyncadd [#allocation3], %s200
      %s203 = sshll.u32 [#allocation2], 4
      %s204 = int_to_ptr.vmem [resolvable:$true] %s203
      %206 = dma.vmem_to_hbm [thread:$0]  %s204, 128, %s4, [#allocation3]
    $region21: #{tpu_custom_call.1} parent=1 // pred_fallthru
      _
    // Predicated region
    $region22: #{tpu_custom_call.1} parent=1 // pred_check
      _
    $region23: #{tpu_custom_call.1} parent=1 // pred_check_branch
      %208 = sbr.rel (0) target = $region25
    $region24: #{tpu_custom_call.1} parent=1 // pred_region
      %209 = dma.done [#allocation3], 128
    $region25: #{tpu_custom_call.1} parent=1 // pred_fallthru
      _
    %210 = vsyncpa [#allocation3], 1

</llo_original>
